<compile_context>
chip_gen: v7x
topology: tpu7x:2x2x1
jax: 0.10.0
libtpu: 0.0.40
codegen_flags: <defaults>
</compile_context>

<pallas_src>
import functools

import jax
import jax.numpy as jnp
from jax import lax
from jax.experimental import pallas as pl
from jax.experimental.pallas import tpu as pltpu


def _interp_matrix(in_size: int, out_size: int) -> jnp.ndarray:
    """Dense (out_size, in_size) bilinear interpolation matrix, align_corners=True."""
    if out_size == 1:
        src = jnp.zeros((1,), jnp.float32)
    else:
        src = jnp.arange(out_size, dtype=jnp.float32) * ((in_size - 1) / (out_size - 1))
    i0 = jnp.clip(jnp.floor(src).astype(jnp.int32), 0, in_size - 1)
    i1 = jnp.minimum(i0 + 1, in_size - 1)
    w1 = src - i0.astype(jnp.float32)
    w0 = 1.0 - w1
    return (jax.nn.one_hot(i0, in_size, dtype=jnp.float32) * w0[:, None]
            + jax.nn.one_hot(i1, in_size, dtype=jnp.float32) * w1[:, None])


def _kron_interp_operator(H, W, Hout, Wout):
    """(H*W, Hout*Wout) operator: out[c, y*Wout+x] = sum_{h,w} x[c, h*W+w] * Wr[y,h] * Wc[x,w]."""
    wr = _interp_matrix(H, Hout)   # (Hout, H)
    wc = _interp_matrix(W, Wout)   # (Wout, W)
    return jnp.einsum("yh,xw->hwyx", wr, wc).reshape(H * W, Hout * Wout)


def _pick_tile(dim: int, target: int, align: int) -> int:
    """Largest multiple of `align` that divides `dim` and is <= target; else the full dim."""
    if dim <= target:
        return dim
    t = (target // align) * align
    while t >= align:
        if dim % t == 0:
            return t
        t -= align
    return dim


# --------------------------------------------------------------------------------------
# Kernels
# --------------------------------------------------------------------------------------

def _interp_kernel(x_ref, k_ref, o_ref, *, compute_dtype):
    # x_ref: (ct, S)   k_ref: (S, st)   o_ref: (ct, st)
    x = x_ref[...].astype(compute_dtype)
    o_ref[...] = jnp.dot(x, k_ref[...],
                         preferred_element_type=jnp.float32).astype(o_ref.dtype)


def _conv_then_interp_kernel(x_ref, w_ref, b_ref, k_ref, o_ref, *, compute_dtype):
    # Upsample path: channel-mix at the (smaller) input resolution, then interpolate.
    # x_ref: (Cin, S)  w_ref: (ct, Cin)  b_ref: (ct, 1) f32  k_ref: (S, st)  o_ref: (ct, st)
    x = x_ref[...].astype(compute_dtype)
    z = jnp.dot(w_ref[...], x, preferred_element_type=jnp.float32)        # (ct, S)
    z = z.astype(compute_dtype)
    out = jnp.dot(z, k_ref[...], preferred_element_type=jnp.float32)      # (ct, st)
    o_ref[...] = (out + b_ref[...]).astype(o_ref.dtype)                   # bias after interp == ref


def _interp_then_conv_kernel(x_ref, wt_ref, b_ref, k_ref, o_ref, acc_ref, *, compute_dtype):
    # Downsample path: interpolate a Cin-tile, channel-mix, accumulate over Cin tiles (axis 2).
    # x_ref: (cti, S)  wt_ref: (cti, Cout)  b_ref: (Cout, 1) f32  k_ref: (S, st)
    # o_ref: (Cout, st)  acc_ref: (Cout, st) f32 scratch
    ci = pl.program_id(2)
    x = x_ref[...].astype(compute_dtype)
    t = jnp.dot(x, k_ref[...], preferred_element_type=jnp.float32)        # (cti, st)
    t = t.astype(compute_dtype)
    partial = lax.dot_general(wt_ref[...], t, (((0,), (0,)), ((), ())),
                              preferred_element_type=jnp.float32)         # (Cout, st)

    @pl.when(ci == 0)
    def _():
        acc_ref[...] = partial

    @pl.when(ci != 0)
    def _():
        acc_ref[...] += partial

    @pl.when(ci == pl.num_programs(2) - 1)
    def _():
        o_ref[...] = (acc_ref[...] + b_ref[...]).astype(o_ref.dtype)


# --------------------------------------------------------------------------------------
# Wrapper
# --------------------------------------------------------------------------------------

def rescale(x, out_size, conv_w=None, conv_b=None, *,
            compute_dtype=jnp.bfloat16, channel_tile=None, sout_tile=None):
    """Pallas equivalent of Rescale.forward(x, out_size).

    x        : (B, Cin, H, W), NCHW
    out_size : (Hout, Wout)
    conv_w   : (Cout, Cin, 1, 1) or None (no pointwise conv when in_cn == out_cn)
    conv_b   : (Cout,) or None
    """
    B, Cin, H, W = x.shape
    Hout, Wout = out_size
    S, Sout = H * W, Hout * Wout
    has_conv = conv_w is not None
    if has_conv:
        assert conv_b is not None, "conv bias required when conv weight is given"
        Cout = conv_w.shape[0]
    else:
        Cout = Cin
    conv_first = has_conv and (Sout > S)       # apply channel mix at the smaller resolution
    C_final = Cout if has_conv else Cin

    # Small, shared operands (cast once in the wrapper; x itself is cast in VMEM).
    K = _kron_interp_operator(H, W, Hout, Wout).astype(compute_dtype)     # (S, Sout)
    x3 = x.reshape(B, Cin, S)                                             # free view of NCHW

    xsz = x.dtype.itemsize
    csz = jnp.dtype(compute_dtype).itemsize
    ct_target = channel_tile if channel_tile is not None else 128
    st_target = sout_tile if sout_tile is not None else 2048
    st = _pick_tile(Sout, st_target, 128)                                 # lane-dim tile
    scratch_shapes = []

    if not has_conv:
        ct = _pick_tile(Cin, ct_target, 8)
        grid = (B, Cin // ct, Sout // st)
        kernel = functools.partial(_interp_kernel, compute_dtype=compute_dtype)
        in_specs = [
            pl.BlockSpec((pl.Squeezed(), ct, S), lambda b, i, j: (b, i, 0)),
            pl.BlockSpec((S, st), lambda b, i, j: (0, j)),
        ]
        args = (x3, K)
        out_specs = pl.BlockSpec((pl.Squeezed(), ct, st), lambda b, i, j: (b, i, j))
        semantics = ("parallel", "parallel", "parallel")
        io_bytes = ct * S * xsz + S * st * csz + ct * st * xsz
        scratch_bytes = 0
    elif conv_first:
        ct = _pick_tile(Cout, ct_target, 8)
        cw = conv_w.reshape(Cout, Cin).astype(compute_dtype)
        cb = conv_b.reshape(Cout, 1).astype(jnp.float32)
        grid = (B, Cout // ct, Sout // st)
        kernel = functools.partial(_conv_then_interp_kernel, compute_dtype=compute_dtype)
        in_specs = [
            pl.BlockSpec((pl.Squeezed(), Cin, S), lambda b, i, j: (b, 0, 0)),
            pl.BlockSpec((ct, Cin), lambda b, i, j: (i, 0)),
            pl.BlockSpec((ct, 1), lambda b, i, j: (i, 0)),
            pl.BlockSpec((S, st), lambda b, i, j: (0, j)),
        ]
        args = (x3, cw, cb, K)
        out_specs = pl.BlockSpec((pl.Squeezed(), ct, st), lambda b, i, j: (b, i, j))
        semantics = ("parallel", "parallel", "parallel")
        io_bytes = Cin * S * xsz + ct * Cin * csz + ct * 4 + S * st * csz + ct * st * xsz
        scratch_bytes = 0
    else:
        # Downsample: interpolate first (smaller output), then conv; Cin is a reduction grid axis.
        cti = _pick_tile(Cin, ct_target, 8)
        cwt = conv_w.reshape(Cout, Cin).T.astype(compute_dtype)           # (Cin, Cout)
        cb = conv_b.reshape(Cout, 1).astype(jnp.float32)
        grid = (B, Sout // st, Cin // cti)
        kernel = functools.partial(_interp_then_conv_kernel, compute_dtype=compute_dtype)
        in_specs = [
            pl.BlockSpec((pl.Squeezed(), cti, S), lambda b, j, k: (b, k, 0)),
            pl.BlockSpec((cti, Cout), lambda b, j, k: (k, 0)),
            pl.BlockSpec((Cout, 1), lambda b, j, k: (0, 0)),
            pl.BlockSpec((S, st), lambda b, j, k: (0, j)),
        ]
        args = (x3, cwt, cb, K)
        out_specs = pl.BlockSpec((pl.Squeezed(), Cout, st), lambda b, j, k: (b, 0, j))
        semantics = ("parallel", "parallel", "arbitrary")
        scratch_shapes = [pltpu.VMEM((Cout, st), jnp.float32)]
        io_bytes = cti * S * xsz + cti * Cout * csz + Cout * 4 + S * st * csz + Cout * st * xsz
        scratch_bytes = Cout * st * 4

    # Scoped-VMEM sized to the double-buffered working set, capped for v7x (64 MiB physical).
    vmem_limit = int(min(max(2 * io_bytes + scratch_bytes + (8 << 20), 32 << 20), 48 << 20))

    out = pl.pallas_call(
        kernel,
        out_shape=jax.ShapeDtypeStruct((B, C_final, Sout), x.dtype),
        grid=grid,
        in_specs=in_specs,
        out_specs=out_specs,
        scratch_shapes=scratch_shapes,
        compiler_params=pltpu.CompilerParams(
            dimension_semantics=semantics, vmem_limit_bytes=vmem_limit),
    )(*args)
    return out.reshape(B, C_final, Hout, Wout)


def _reference(x, out_size, conv_w=None, conv_b=None):
    """Pure-JAX reference (separable bilinear align_corners=True + optional 1x1 conv)."""
    B, Cin, H, W = x.shape
    Hout, Wout = out_size
    wy = _interp_matrix(H, Hout)     # (Hout, H)
    wxm = _interp_matrix(W, Wout)    # (Wout, W)
    interp = jnp.einsum("yh,bchw,xw->bcyx", wy, x, wxm)
    if conv_w is None:
        return interp
    Cout = conv_w.shape[0]
    cw = conv_w.reshape(Cout, Cin)
    return jnp.einsum("oc,bcyx->boyx", cw, interp) + conv_b[None, :, None, None]


if __name__ == "__main__":
    key = jax.random.PRNGKey(0)
    ks = jax.random.split(key, 8)
    B = 2

    # Case 1: upsample 8x8 -> 16x16 with a 1x1 conv (conv fused BEFORE interpolation), bf16 MXU feed.
    Cin, Cout = 4, 8
    x = jax.random.normal(ks[0], (B, Cin, 8, 8), dtype=jnp.float32)
    w1 = 0.1 * jax.random.normal(ks[1], (Cout, Cin, 1, 1), dtype=jnp.float32)
    b1 = 0.1 * jax.random.normal(ks[2], (Cout,), dtype=jnp.float32)
    out = jax.block_until_ready(rescale(x, (16, 16), w1, b1))
    ref = _reference(x, (16, 16), w1, b1)
    assert out.shape == (B, Cout, 16, 16), out.shape
    assert jnp.allclose(out, ref, rtol=5e-2, atol=5e-2), float(jnp.max(jnp.abs(out - ref)))

    # Case 1b: same shapes, f32 MXU operands -> tight tolerance.
    out_f32 = jax.block_until_ready(rescale(x, (16, 16), w1, b1, compute_dtype=jnp.float32))
    assert jnp.allclose(out_f32, ref, rtol=1e-3, atol=1e-3), float(jnp.max(jnp.abs(out_f32 - ref)))

    # Case 2: downsample 16x16 -> 8x12 with a 1x1 conv (conv fused AFTER interpolation).
    x2 = jax.random.normal(ks[3], (B, Cout, 16, 16), dtype=jnp.float32)
    w2 = 0.1 * jax.random.normal(ks[4], (Cin, Cout, 1, 1), dtype=jnp.float32)
    b2 = 0.1 * jax.random.normal(ks[5], (Cin,), dtype=jnp.float32)
    out2 = jax.block_until_ready(rescale(x2, (8, 12), w2, b2))
    ref2 = _reference(x2, (8, 12), w2, b2)
    assert out2.shape == (B, Cin, 8, 12), out2.shape
    assert jnp.allclose(out2, ref2, rtol=5e-2, atol=5e-2), float(jnp.max(jnp.abs(out2 - ref2)))

    # Case 3: in_cn == out_cn -> no pointwise conv (identity channel mix skipped entirely).
    out3 = jax.block_until_ready(rescale(x, (16, 16)))
    ref3 = _reference(x, (16, 16))
    assert out3.shape == (B, Cin, 16, 16), out3.shape
    assert jnp.allclose(out3, ref3, rtol=5e-2, atol=5e-2), float(jnp.max(jnp.abs(out3 - ref3)))

    # Case 4: multi-tile conv-first path (3 Cout tiles x 2 Sout tiles on the grid), f32 compute.
    x4 = jax.random.normal(ks[6], (B, 8, 8, 16), dtype=jnp.float32)
    w4 = 0.1 * jax.random.normal(ks[1], (24, 8, 1, 1), dtype=jnp.float32)
    b4 = 0.1 * jax.random.normal(ks[2], (24,), dtype=jnp.float32)
    out4 = jax.block_until_ready(
        rescale(x4, (16, 32), w4, b4, compute_dtype=jnp.float32, channel_tile=8, sout_tile=256))
    ref4 = _reference(x4, (16, 32), w4, b4)
    assert out4.shape == (B, 24, 16, 32), out4.shape
    assert jnp.allclose(out4, ref4, rtol=1e-3, atol=1e-3), float(jnp.max(jnp.abs(out4 - ref4)))

    # Case 5: multi-tile conv-last path (2 Cin reduction tiles x 2 Sout tiles), f32 compute.
    x5 = jax.random.normal(ks[7], (B, 16, 16, 16), dtype=jnp.float32)
    w5 = 0.1 * jax.random.normal(ks[4], (8, 16, 1, 1), dtype=jnp.float32)
    b5 = 0.1 * jax.random.normal(ks[5], (8,), dtype=jnp.float32)
    out5 = jax.block_until_ready(
        rescale(x5, (8, 32), w5, b5, compute_dtype=jnp.float32, channel_tile=8, sout_tile=128))
    ref5 = _reference(x5, (8, 32), w5, b5)
    assert out5.shape == (B, 8, 8, 32), out5.shape
    assert jnp.allclose(out5, ref5, rtol=1e-3, atol=1e-3), float(jnp.max(jnp.abs(out5 - ref5)))

    print("KERNEL_OK")
</pallas_src>

<mosaic_0001>
module attributes {stable_mosaic.version = 11 : i64} {
  func.func @_conv_then_interp_kernel(%arg0: i32, %arg1: i32, %arg2: i32, %arg3: memref<1x4x64xf32, #tpu.memory_space<vmem>>, %arg4: memref<8x4xbf16, #tpu.memory_space<vmem>>, %arg5: memref<8x1xf32, #tpu.memory_space<vmem>>, %arg6: memref<64x256xbf16, #tpu.memory_space<vmem>>, %arg7: memref<1x8x256xf32, #tpu.memory_space<vmem>>) attributes {dimension_semantics = [#tpu.dimension_semantics<parallel>, #tpu.dimension_semantics<parallel>, #tpu.dimension_semantics<parallel>], iteration_bounds = array<i64: 2, 1, 1>, scalar_prefetch = 0 : i64, scratch_operands = 0 : i64, tpu.core_type = #tpu.core_type<tc>, window_params = [{transform_indices = @transform_0, window_bounds = array<i64: 1, 4, 64>}, {transform_indices = @transform_1, window_bounds = array<i64: 8, 4>}, {transform_indices = @transform_2, window_bounds = array<i64: 8, 1>}, {transform_indices = @transform_3, window_bounds = array<i64: 64, 256>}, {transform_indices = @transform_4, window_bounds = array<i64: 1, 8, 256>}]} {
    %c0 = arith.constant 0 : index
    %c0_0 = arith.constant 0 : index
    %c0_1 = arith.constant 0 : index
    %0 = vector.load %arg3[%c0, %c0_0, %c0_1] : memref<1x4x64xf32, #tpu.memory_space<vmem>>, vector<1x4x64xf32>
    %1 = vector.shape_cast %0 : vector<1x4x64xf32> to vector<4x64xf32>
    %2 = arith.truncf %1 : vector<4x64xf32> to vector<4x64xbf16>
    %c0_2 = arith.constant 0 : index
    %c0_3 = arith.constant 0 : index
    %3 = vector.load %arg4[%c0_2, %c0_3] : memref<8x4xbf16, #tpu.memory_space<vmem>>, vector<8x4xbf16>
    %cst = arith.constant dense<0.000000e+00> : vector<8x64xf32>
    %4 = tpu.matmul %3, %2, %cst {dimension_numbers = #tpu.dot_dimension_numbers<[1], [0], [0], [1], [0, 0, 1, 1], [], []>} : vector<8x4xbf16>, vector<4x64xbf16>, vector<8x64xf32> -> vector<8x64xf32>
    %5 = arith.truncf %4 : vector<8x64xf32> to vector<8x64xbf16>
    %c0_4 = arith.constant 0 : index
    %c0_5 = arith.constant 0 : index
    %6 = vector.load %arg6[%c0_4, %c0_5] : memref<64x256xbf16, #tpu.memory_space<vmem>>, vector<64x256xbf16>
    %cst_6 = arith.constant dense<0.000000e+00> : vector<8x256xf32>
    %7 = tpu.matmul %5, %6, %cst_6 {dimension_numbers = #tpu.dot_dimension_numbers<[1], [0], [0], [1], [0, 0, 1, 1], [], []>} : vector<8x64xbf16>, vector<64x256xbf16>, vector<8x256xf32> -> vector<8x256xf32>
    %c0_7 = arith.constant 0 : index
    %c0_8 = arith.constant 0 : index
    %8 = vector.load %arg5[%c0_7, %c0_8] : memref<8x1xf32, #tpu.memory_space<vmem>>, vector<8x1xf32>
    %9 = vector.broadcast %8 : vector<8x1xf32> to vector<8x256xf32>
    %10 = arith.addf %7, %9 : vector<8x256xf32>
    %c0_9 = arith.constant 0 : index
    %c0_10 = arith.constant 0 : index
    %c0_11 = arith.constant 0 : index
    %11 = vector.load %arg7[%c0_9, %c0_10, %c0_11] : memref<1x8x256xf32, #tpu.memory_space<vmem>>, vector<1x8x256xf32>
    %12 = vector.shape_cast %11 : vector<1x8x256xf32> to vector<8x256xf32>
    %13 = vector.shape_cast %10 : vector<8x256xf32> to vector<1x8x256xf32>
    tpu.vector_store %arg7[%c0_9, %c0_10, %c0_11], %13 {strides = array<i32>} : memref<1x8x256xf32, #tpu.memory_space<vmem>>, vector<1x8x256xf32>,
    return
  }
  func.func @transform_0(%arg0: i32, %arg1: i32, %arg2: i32) -> (i32, i32, i32) {
    %c0_i32 = arith.constant 0 : i32
    %c0_i32_0 = arith.constant 0 : i32
    %c0_i32_1 = arith.constant 0 : i32
    return %arg0, %c0_i32, %c0_i32_0 : i32, i32, i32
  }
  func.func @transform_1(%arg0: i32, %arg1: i32, %arg2: i32) -> (i32, i32) {
    %c0_i32 = arith.constant 0 : i32
    %c0_i32_0 = arith.constant 0 : i32
    return %arg1, %c0_i32 : i32, i32
  }
  func.func @transform_2(%arg0: i32, %arg1: i32, %arg2: i32) -> (i32, i32) {
    %c0_i32 = arith.constant 0 : i32
    %c0_i32_0 = arith.constant 0 : i32
    return %arg1, %c0_i32 : i32, i32
  }
  func.func @transform_3(%arg0: i32, %arg1: i32, %arg2: i32) -> (i32, i32) {
    %c0_i32 = arith.constant 0 : i32
    %c0_i32_0 = arith.constant 0 : i32
    return %c0_i32, %arg2 : i32, i32
  }
  func.func @transform_4(%arg0: i32, %arg1: i32, %arg2: i32) -> (i32, i32, i32) {
    %c0_i32 = arith.constant 0 : i32
    return %arg0, %arg1, %arg2 : i32, i32, i32
  }
}

</mosaic_0001>

<llo_original>
// kernel: tpu_custom_call.1
$region0: #{tpu_custom_call.1}
  #allocation0 [shape = 'u32[]', space=smem, size = 0x4, offset = 0x4, fixed_abs, tag = 'smem constant byte address 0x4 - core index']
  #allocation1 [shape = 'u32[144,128]{1,0:T(1,128)}', space=vmem, size = 0x12000, scoped, tag = 'internal scratch']
  %s0 = inlined_call_operand.vmem [shape: f32[2,4,64], index: 0, kind: input, shape index: {}]
  %s1 = inlined_call_operand.vmem [shape: bf16[8,4], index: 1, kind: input, shape index: {}]
  %s2 = inlined_call_operand.vmem [shape: f32[8,1], index: 2, kind: input, shape index: {}]
  %s3 = inlined_call_operand.hbm [shape: bf16[64,256], index: 3, kind: input, shape index: {}]
  %s4 = inlined_call_operand.hbm [shape: f32[2,8,256], index: 4, kind: output, shape index: {}]
  %s5 = sld [smem:[#allocation0]]
  $region53: #{tpu_custom_call.1} parent=0
    _
  %s7 = ssub.s32 1, %s5
  %s8 = scalar_select 0, %s7, %s5
  $region1: #{tpu_custom_call.1} parent=0
    #allocation2 [shape = 'u8[32768]{0}', space=vmem, size = 0x8000, scoped, tag = 'input window, operand 3, single buffered']
    #allocation3 [shape = 's32[2]{0}', space=sflag, size = 0x8, scoped, tag = 'scoped memory for tpu_custom_call.1']
    #allocation4 [shape = 's32[2]{0}', space=sflag, size = 0x8, scoped, tag = 'scoped memory for tpu_custom_call.1']
    #allocation5 [shape = 'u8[16384]{0}', space=vmem, size = 0x4000, scoped, tag = 'output window, operand 0']
    %9 = vsyncpa [#allocation3], 0
    %10 = vsyncpa [#allocation4], 0
    %s11 = scalar_lea.sflag [#allocation4], 1
    %12 = vsyncpa %s11, 0
    loop: start=0, step=1, limit=4
    $region2: #{tpu_custom_call.1} parent=1 // loop_pre_header
      _
    $region3: #{tpu_custom_call.1} parent=1 // loop_header
      %s14 = sphi 0, %s18
      %p15 = scmp.ge.s32.totalorder %s14, 4
      %s21 = sphi 0, %s40
      %s22 = sphi 0, %s36
      %s23 = sphi 0, %s32
      %s24 = sphi 0, %s21
      %s25 = sphi 0, %s22
      %s26 = sphi 0, %s23
      %s27 = sphi 0, %s24
      %s28 = sphi 0, %s25
      %s29 = sphi 0, %s26
      %s43 = sphi 0, %s45
      %s46 = sphi 0, %s43
      %s47 = sphi 0, %s46
      %s63 = sphi 0, %s47
      %s69 = sphi 0, %s71
      %s72 = sphi 0, %s69
      %s73 = sphi 0, %s72
      %s89 = sphi 0, %s73
      %s95 = sphi 0, %s97
      %s98 = sphi 0, %s95
      %s99 = sphi 0, %s98
      %s115 = sphi 0, %s99
      %s121 = sphi 0, %s123
      %s124 = sphi 0, %s121
      %s125 = sphi 0, %s124
      %s141 = sphi 0, %s125
      %s151 = sphi 0, %s153
      %s154 = sphi 0, %s151
      %s155 = sphi 0, %s154
      %s171 = sphi 0, %s155
    $region4: #{tpu_custom_call.1} parent=1 // loop_header_branch
      %17 = sbr.rel (%p15) target = $region8
    $region5: #{tpu_custom_call.1} parent=1 // loop_body
      %s19 = ssub.s32 %s14, 1
      %s20 = ssub.s32 %s14, 2
      %s30 = sadd.s32 1, %s23
      %p31 = scmp.ge.s32.totalorder %s30, 1
      %s32 = scalar_select %p31, 0, %s30
      %s33 = sadd.s32 1, %s22
      %s34 = scalar_select %p31, %s33, %s22
      %p35 = scmp.ge.s32.totalorder %s34, 1
      %s36 = scalar_select %p35, 0, %s34
      %s37 = sadd.s32 1, %s21
      %s38 = scalar_select %p35, %s37, %s21
      %p39 = scmp.ge.s32.totalorder %s38, 2
      %s40 = scalar_select %p39, 0, %s38
      %s41 = ssub.s32 %s21, %s40
      %p42 = scmp.eq.s32.totalorder %s41, 0
      %s44 = sadd.s32 %s43, 1
      %s45 = scalar_select %p42, %s43, %s44
      %p48 = pneg %p42
      %p49 = scmp.eq.s32.totalorder %s14, 1
      %p50 = por %p48, %p49
      %p51 = scmp.ne.s32.totalorder %s43, %s46
      %p52 = scmp.eq.s32.totalorder %s14, 0
      %p53 = por %p51, %p52
      %p54 = scmp.ne.s32.totalorder %s43, %s46
      %p55 = scmp.eq.s32.totalorder %s19, 1
      %p56 = por %p54, %p55
      %p57 = scmp.ne.s32.totalorder %s46, %s47
      %p58 = scmp.eq.s32.totalorder %s19, 0
      %p59 = por %p57, %p58
      %p60 = scmp.ne.s32.totalorder %s46, %s47
      %p61 = scmp.eq.s32.totalorder %s20, 1
      %p62 = por %p60, %p61
      %p64 = scmp.ne.s32.totalorder %s47, %s63
      %p65 = scmp.eq.s32.totalorder %s20, 0
      %p66 = por %p64, %p65
      %s67 = ssub.s32 %s22, %s36
      %p68 = scmp.eq.s32.totalorder %s67, 0
      %s70 = sadd.s32 %s69, 1
      %s71 = scalar_select %p68, %s69, %s70
      %p74 = pneg %p68
      %p75 = scmp.eq.s32.totalorder %s14, 1
      %p76 = por %p74, %p75
      %p77 = scmp.ne.s32.totalorder %s69, %s72
      %p78 = scmp.eq.s32.totalorder %s14, 0
      %p79 = por %p77, %p78
      %p80 = scmp.ne.s32.totalorder %s69, %s72
      %p81 = scmp.eq.s32.totalorder %s19, 1
      %p82 = por %p80, %p81
      %p83 = scmp.ne.s32.totalorder %s72, %s73
      %p84 = scmp.eq.s32.totalorder %s19, 0
      %p85 = por %p83, %p84
      %p86 = scmp.ne.s32.totalorder %s72, %s73
      %p87 = scmp.eq.s32.totalorder %s20, 1
      %p88 = por %p86, %p87
      %p90 = scmp.ne.s32.totalorder %s73, %s89
      %p91 = scmp.eq.s32.totalorder %s20, 0
      %p92 = por %p90, %p91
      %s93 = ssub.s32 %s22, %s36
      %p94 = scmp.eq.s32.totalorder %s93, 0
      %s96 = sadd.s32 %s95, 1
      %s97 = scalar_select %p94, %s95, %s96
      %p100 = pneg %p94
      %p101 = scmp.eq.s32.totalorder %s14, 1
      %p102 = por %p100, %p101
      %p103 = scmp.ne.s32.totalorder %s95, %s98
      %p104 = scmp.eq.s32.totalorder %s14, 0
      %p105 = por %p103, %p104
      %p106 = scmp.ne.s32.totalorder %s95, %s98
      %p107 = scmp.eq.s32.totalorder %s19, 1
      %p108 = por %p106, %p107
      %p109 = scmp.ne.s32.totalorder %s98, %s99
      %p110 = scmp.eq.s32.totalorder %s19, 0
      %p111 = por %p109, %p110
      %p112 = scmp.ne.s32.totalorder %s98, %s99
      %p113 = scmp.eq.s32.totalorder %s20, 1
      %p114 = por %p112, %p113
      %p116 = scmp.ne.s32.totalorder %s99, %s115
      %p117 = scmp.eq.s32.totalorder %s20, 0
      %p118 = por %p116, %p117
      %s119 = ssub.s32 %s23, %s32
      %p120 = scmp.eq.s32.totalorder %s119, 0
      %s122 = sadd.s32 %s121, 1
      %s123 = scalar_select %p120, %s121, %s122
      %p126 = pneg %p120
      %p127 = scmp.eq.s32.totalorder %s14, 1
      %p128 = por %p126, %p127
      %p129 = scmp.ne.s32.totalorder %s121, %s124
      %p130 = scmp.eq.s32.totalorder %s14, 0
      %p131 = por %p129, %p130
      %p132 = scmp.ne.s32.totalorder %s121, %s124
      %p133 = scmp.eq.s32.totalorder %s19, 1
      %p134 = por %p132, %p133
      %p135 = scmp.ne.s32.totalorder %s124, %s125
      %p136 = scmp.eq.s32.totalorder %s19, 0
      %p137 = por %p135, %p136
      %p138 = scmp.ne.s32.totalorder %s124, %s125
      %p139 = scmp.eq.s32.totalorder %s20, 1
      %p140 = por %p138, %p139
      %p142 = scmp.ne.s32.totalorder %s125, %s141
      %p143 = scmp.eq.s32.totalorder %s20, 0
      %p144 = por %p142, %p143
      %s145 = ssub.s32 %s21, %s40
      %s146 = ssub.s32 %s22, %s36
      %s147 = sor.u32 %s145, %s146
      %s148 = ssub.s32 %s23, %s32
      %s149 = sor.u32 %s147, %s148
      %p150 = scmp.eq.s32.totalorder %s149, 0
      %s152 = sadd.s32 %s151, 1
      %s153 = scalar_select %p150, %s151, %s152
      %p156 = pneg %p150
      %p157 = scmp.eq.s32.totalorder %s14, 1
      %p158 = por %p156, %p157
      %p159 = scmp.ne.s32.totalorder %s151, %s154
      %p160 = scmp.eq.s32.totalorder %s14, 0
      %p161 = por %p159, %p160
      %p162 = scmp.ne.s32.totalorder %s151, %s154
      %p163 = scmp.eq.s32.totalorder %s19, 1
      %p164 = por %p162, %p163
      %p165 = scmp.ne.s32.totalorder %s154, %s155
      %p166 = scmp.eq.s32.totalorder %s19, 0
      %p167 = por %p165, %p166
      %p168 = scmp.ne.s32.totalorder %s154, %s155
      %p169 = scmp.eq.s32.totalorder %s20, 1
      %p170 = por %p168, %p169
      %p172 = scmp.ne.s32.totalorder %s155, %s171
      %p173 = scmp.eq.s32.totalorder %s20, 0
      %p174 = por %p172, %p173
      %p175 = scmp.le.s32.totalorder 1, %s14
      %p176 = scmp.lt.s32.totalorder %s14, 3
      %p177 = pnand %p175, %p176
      %p178 = pneg %p177
      // Predicated region
      $region9: #{tpu_custom_call.1} parent=5 // pred_check
        _
      $region10: #{tpu_custom_call.1} parent=5 // pred_check_branch
        %180 = sbr.rel (%p177) target = $region12
      $region11: #{tpu_custom_call.1} parent=5 // pred_region
        %s181 = ssub.s32 %s14, 1
        // Predicated region
        $region13: #{tpu_custom_call.1} parent=11 // pred_check
          %p182 = pneg %p85
        $region14: #{tpu_custom_call.1} parent=11 // pred_check_branch
          %184 = sbr.rel (%p182) target = $region16
        $region15: #{tpu_custom_call.1} parent=11 // pred_region
          %p185 = scmp.lt.s32.totalorder %s25, 0
          %s186 = scalar_select %p185, %s25, 0
          %s187 = smul.addr %s186, 4
          %s188 = scalar_lea.vmem %s1, %s187
        $region16: #{tpu_custom_call.1} parent=11 // pred_fallthru
          _
        // Predicated region
        $region17: #{tpu_custom_call.1} parent=11 // pred_check
          %p189 = pneg %p111
        $region18: #{tpu_custom_call.1} parent=11 // pred_check_branch
          %191 = sbr.rel (%p189) target = $region20
        $region19: #{tpu_custom_call.1} parent=11 // pred_region
          %p192 = scmp.lt.s32.totalorder %s25, 0
          %s193 = scalar_select %p192, %s25, 0
          %s194 = smul.addr %s193, 8
          %s195 = scalar_lea.vmem %s2, %s194
        $region20: #{tpu_custom_call.1} parent=11 // pred_fallthru
          _
        // Predicated region
        $region21: #{tpu_custom_call.1} parent=11 // pred_check
          %p196 = pneg %p137
        $region22: #{tpu_custom_call.1} parent=11 // pred_check_branch
          %198 = sbr.rel (%p196) target = $region24
        $region23: #{tpu_custom_call.1} parent=11 // pred_region
          %s199 = smul.u32 2, %s26
          %s201 = ssub.s32 1024, 1024
          %202 = vsyncadd [#allocation3], %s201
          %s203 = smul.addr %s199, 64
          %s204 = scalar_lea.hbm %s3, %s203
          %s205 = sshll.u32 [#allocation2], 4
          %s206 = int_to_ptr.vmem [resolvable:$true] %s205
          %211 = dma.hbm_to_vmem [thread:$0]  %s204, 1024, %s206, [#allocation3], 128, 128, 8
        $region24: #{tpu_custom_call.1} parent=11 // pred_fallthru
          _
      $region12: #{tpu_custom_call.1} parent=5 // pred_fallthru
        _
      %p212 = scmp.lt.s32.totalorder %s14, 2
      // Predicated region
      $region25: #{tpu_custom_call.1} parent=5 // pred_check
        %p213 = pneg %p212
      $region26: #{tpu_custom_call.1} parent=5 // pred_check_branch
        %215 = sbr.rel (%p213) target = $region28
      $region27: #{tpu_custom_call.1} parent=5 // pred_region
        // Predicated region
        $region29: #{tpu_custom_call.1} parent=27 // pred_check
          %p216 = pneg %p53
        $region30: #{tpu_custom_call.1} parent=27 // pred_check_branch
          %218 = sbr.rel (%p216) target = $region32
        $region31: #{tpu_custom_call.1} parent=27 // pred_region
          %p219 = scmp.lt.s32.totalorder %s21, 1
          %s220 = scalar_select %p219, %s21, 1
          %s221 = smul.addr %s220, 4
          %s222 = scalar_lea.vmem %s0, %s221
        $region32: #{tpu_custom_call.1} parent=27 // pred_fallthru
          _
      $region28: #{tpu_custom_call.1} parent=5 // pred_fallthru
        _
      %p223 = scmp.le.s32.totalorder 1, %s14
      %p224 = scmp.lt.s32.totalorder %s14, 3
      %p225 = pnand %p223, %p224
      %p226 = pneg %p225
      // Predicated region
      $region33: #{tpu_custom_call.1} parent=5 // pred_check
        _
      $region34: #{tpu_custom_call.1} parent=5 // pred_check_branch
        %228 = sbr.rel (%p225) target = $region36
      $region35: #{tpu_custom_call.1} parent=5 // pred_region
        %s229 = ssub.s32 %s14, 1
        // Predicated region
        $region37: #{tpu_custom_call.1} parent=35 // pred_check
          %p230 = pneg %p137
        $region38: #{tpu_custom_call.1} parent=35 // pred_check_branch
          %232 = sbr.rel (%p230) target = $region40
        $region39: #{tpu_custom_call.1} parent=35 // pred_region
          %233 = dma.done [#allocation3], 1024
        $region40: #{tpu_custom_call.1} parent=35 // pred_fallthru
          _
        %p234 = scmp.lt.s32.totalorder %s24, 1
        %s235 = scalar_select %p234, %s24, 1
        %s236 = smul.addr %s235, 4
        %s237 = scalar_lea.vmem %s0, %s236
        %p238 = pneg %p59
        %p239 = pneg %p56
        %p240 = scmp.lt.s32.totalorder %s25, 0
        %s241 = scalar_select %p240, %s25, 0
        %s242 = smul.addr %s241, 4
        %s243 = scalar_lea.vmem %s1, %s242
        %p244 = pneg %p85
        %p245 = pneg %p82
        %p246 = scmp.lt.s32.totalorder %s25, 0
        %s247 = scalar_select %p246, %s25, 0
        %s248 = smul.addr %s247, 8
        %s249 = scalar_lea.vmem %s2, %s248
        %p250 = pneg %p111
        %p251 = pneg %p108
        %p252 = pneg %p137
        %p253 = pneg %p134
        %p254 = pneg %p167
        %p255 = pneg %p164
        %s256 = sand.u32 %s154, 1
        %s257 = scalar_lea.sflag [#allocation4], %s256
        %s258 = sand.u32 %s154, 1
        %s259 = smul.addr %s258, 16
        %s260 = scalar_lea.vmem [#allocation5], %s259
        %p261 = scmp.lt.s32.totalorder %s24, 1
        %s262 = scalar_select %p261, %s24, 1
        %s263 = smul.addr %s262, 4
        %s264 = scalar_lea.vmem %s0, %s263
        %p265 = scmp.lt.s32.totalorder %s25, 0
        %s266 = scalar_select %p265, %s25, 0
        %s267 = smul.addr %s266, 4
        %s268 = scalar_lea.vmem %s1, %s267
        %p269 = scmp.lt.s32.totalorder %s25, 0
        %s270 = scalar_select %p269, %s25, 0
        %s271 = smul.addr %s270, 8
        %s272 = scalar_lea.vmem %s2, %s271
        %s273 = smul.u32 2, %s26
        %s274 = smul.u32 2, %s26
        %v276 = vld [vmem:[%s264] sm:$0xf]
        %v277 = vpack.c.bf16 %v276, %v276
        %v278 = vld [vmem:[%s268] sm:$0xf]
        %vm279 = vcmask 31744
        %v281 = vsel %vm279, %v278, 0
        %vm283 = vcmask 1041408
        %v285 = vsel %vm283, %v277, 0
        %287 = vmatprep.subr.bf16.mxu0 0
        %288 = vmatpush1.bf16.msra.mxu0 %v285
        %289 = vmatprep.subr.bf16.mxu0 0
        %290 = vmatpush1.bf16.msra.mxu0 0
        %291 = vmatprep.subr.bf16.mxu0 0
        %292 = vmatpush1.bf16.msra.mxu0 0
        %293 = vmatprep.subr.bf16.mxu0 0
        %294 = vmatpush1.bf16.msra.mxu0 0
        %295 = vmatprep.subr.bf16.mxu0 0
        %296 = vmatpush1.bf16.msra.mxu0 0
        %297 = vmatprep.subr.bf16.mxu0 0
        %298 = vmatpush1.bf16.msra.mxu0 0
        %299 = vmatprep.subr.bf16.mxu0 0
        %300 = vmatpush1.bf16.msra.mxu0 0
        %301 = vmatprep.subr.bf16.mxu0 0
        %302 = vmatpush1.bf16.msra.mxu0 0
        %303 = vmatprep.subr.bf16.mxu0 0
        %304 = vmatpush1.bf16.msra.mxu0 0
        %305 = vmatprep.subr.bf16.mxu0 0
        %306 = vmatpush1.bf16.msra.mxu0 0
        %307 = vmatprep.subr.bf16.mxu0 0
        %308 = vmatpush1.bf16.msra.mxu0 0
        %309 = vmatprep.subr.bf16.mxu0 0
        %310 = vmatpush1.bf16.msra.mxu0 0
        %311 = vmatprep.subr.bf16.mxu0 0
        %312 = vmatpush1.bf16.msra.mxu0 0
        %313 = vmatprep.subr.bf16.mxu0 0
        %314 = vmatpush1.bf16.msra.mxu0 0
        %315 = vmatprep.subr.bf16.mxu0 0
        %316 = vmatpush1.bf16.msra.mxu0 0
        %317 = vmatprep.subr.bf16.mxu0 0
        %318 = vmatpush1.bf16.msra.mxu0 0
        %319 = vmatprep.mubr.bf16.mxu0 0
        %320 = vmatmul.mubr.bf16.gmra.mrb[0].mxu0 %v281
        %v321 = vpop.f32.mrb[0].mxu0
        %v322 = vadd.f32 0.0, %v321
        %v323 = vpop.f32.mrb[0].mxu0
        %v324 = vpop.f32.mrb[0].mxu0
        %v325 = vpop.f32.mrb[0].mxu0
        %326 = vdwg.mxu0
        %v327 = vpack.c.bf16 %v322, %v322
        %v328 = vld [vmem:[#allocation2] sm:$0xff]
        %v329 = vld [vmem:[#allocation2 + $0x8] sm:$0xff]
        %v330 = vld [vmem:[#allocation2 + $0x10] sm:$0xff]
        %v331 = vld [vmem:[#allocation2 + $0x18] sm:$0xff]
        %v332 = vld [vmem:[#allocation2 + $0x20] sm:$0xff]
        %v333 = vld [vmem:[#allocation2 + $0x28] sm:$0xff]
        %v334 = vld [vmem:[#allocation2 + $0x30] sm:$0xff]
        %v335 = vld [vmem:[#allocation2 + $0x38] sm:$0xff]
        %v336 = vld [vmem:[%s272] sm:$0xff]
        %338 = vset.pattern.permute.xlu0 0
        %339 = vperm.xlu0 %338, %v336
        %v340 = vpop.permute.xlu0 %339
        %v350 = vunpack.c.l.b16 %v328
        %v351 = vunpack.c.h.b16 %v328
        %v352 = vunpack.c.l.b16 %v329
        %v353 = vunpack.c.h.b16 %v329
        %v354 = vunpack.c.l.b16 %v330
        %v355 = vunpack.c.h.b16 %v330
        %v356 = vunpack.c.l.b16 %v331
        %v357 = vunpack.c.h.b16 %v331
        %v358 = vunpack.c.l.b16 %v332
        %v359 = vunpack.c.h.b16 %v332
        %v360 = vunpack.c.l.b16 %v333
        %v361 = vunpack.c.h.b16 %v333
        %v362 = vunpack.c.l.b16 %v334
        %v363 = vunpack.c.h.b16 %v334
        %v364 = vunpack.c.l.b16 %v335
        %v365 = vunpack.c.h.b16 %v335
        %v366 = vpack.c.b16 %v352, %v350
        %v367 = vpack.c.b16 %v353, %v351
        %v368 = vpack.c.b16 %v356, %v354
        %v369 = vpack.c.b16 %v357, %v355
        %v370 = vpack.c.b16 %v360, %v358
        %v371 = vpack.c.b16 %v361, %v359
        %v372 = vpack.c.b16 %v364, %v362
        %v373 = vpack.c.b16 %v365, %v363
        %vm382 = vcmask 523264
        %v384 = vsel %vm382, %v327, 0
        %386 = vmatprep.subr.bf16.mxu0 %v367
        %387 = vmatpush1.bf16.msra.mxu0 %v366
        %388 = vmatprep.subr.bf16.mxu0 %v369
        %389 = vmatpush1.bf16.msra.mxu0 %v368
        %390 = vmatprep.subr.bf16.mxu0 %v371
        %391 = vmatpush1.bf16.msra.mxu0 %v370
        %392 = vmatprep.subr.bf16.mxu0 %v373
        %393 = vmatpush1.bf16.msra.mxu0 %v372
        %394 = vmatprep.subr.bf16.mxu0 0
        %395 = vmatpush1.bf16.msra.mxu0 0
        %396 = vmatprep.subr.bf16.mxu0 0
        %397 = vmatpush1.bf16.msra.mxu0 0
        %398 = vmatprep.subr.bf16.mxu0 0
        %399 = vmatpush1.bf16.msra.mxu0 0
        %400 = vmatprep.subr.bf16.mxu0 0
        %401 = vmatpush1.bf16.msra.mxu0 0
        %402 = vmatprep.subr.bf16.mxu0 0
        %403 = vmatpush1.bf16.msra.mxu0 0
        %404 = vmatprep.subr.bf16.mxu0 0
        %405 = vmatpush1.bf16.msra.mxu0 0
        %406 = vmatprep.subr.bf16.mxu0 0
        %407 = vmatpush1.bf16.msra.mxu0 0
        %408 = vmatprep.subr.bf16.mxu0 0
        %409 = vmatpush1.bf16.msra.mxu0 0
        %410 = vmatprep.subr.bf16.mxu0 0
        %411 = vmatpush1.bf16.msra.mxu0 0
        %412 = vmatprep.subr.bf16.mxu0 0
        %413 = vmatpush1.bf16.msra.mxu0 0
        %414 = vmatprep.subr.bf16.mxu0 0
        %415 = vmatpush1.bf16.msra.mxu0 0
        %416 = vmatprep.subr.bf16.mxu0 0
        %417 = vmatpush1.bf16.msra.mxu0 0
        %418 = vmatprep.mubr.bf16.mxu0 0
        %419 = vmatmul.mubr.bf16.gmra.mrb[0].mxu0 %v384
        %v420 = vpop.f32.mrb[0].mxu0
        %v421 = vadd.f32 %v340, %v420
        %v422 = vpop.f32.mrb[0].mxu0
        %v423 = vadd.f32 %v340, %v422
        %v424 = vpop.f32.mrb[0].mxu0
        %v425 = vpop.f32.mrb[0].mxu0
        %426 = vdwg.mxu0
        %427 = vst [vmem:[%s260] sm:$0xff] %v421
        %428 = vst [vmem:[%s260 + $0x8] sm:$0xff] %v423
        %s429 = sand.u32 %s154, 1
        %s430 = scalar_lea.sflag [#allocation4], %s429
        %s431 = sand.u32 %s154, 1
        %s432 = smul.addr %s431, 16
        %s433 = scalar_lea.vmem [#allocation5], %s432
        // Predicated region
        $region41: #{tpu_custom_call.1} parent=35 // pred_check
          %p434 = pneg %p164
        $region42: #{tpu_custom_call.1} parent=35 // pred_check_branch
          %436 = sbr.rel (%p434) target = $region44
        $region43: #{tpu_custom_call.1} parent=35 // pred_region
          %s437 = smul.u32 2, %s26
          %s439 = ssub.s32 256, 256
          %440 = vsyncadd %s430, %s439
          %s441 = smul.addr %s25, 2
          %s442 = sadd.s32 %s437, %s441
          %s443 = smul.addr %s24, 2
          %s444 = sadd.s32 %s442, %s443
          %s445 = smul.addr %s444, 128
          %s446 = scalar_lea.hbm %s4, %s445
          %s448 = sshll.u32 %s433, 4
          %s449 = int_to_ptr.vmem [resolvable:$true] %s448
          %451 = dma.vmem_to_hbm [thread:$0]  %s449, 256, %s446, %s430
        $region44: #{tpu_custom_call.1} parent=35 // pred_fallthru
          _
      $region36: #{tpu_custom_call.1} parent=5 // pred_fallthru
        _
      %p452 = scmp.le.s32.totalorder 2, %s14
      // Predicated region
      $region45: #{tpu_custom_call.1} parent=5 // pred_check
        %p453 = pneg %p452
      $region46: #{tpu_custom_call.1} parent=5 // pred_check_branch
        %455 = sbr.rel (%p453) target = $region48
      $region47: #{tpu_custom_call.1} parent=5 // pred_region
        %s456 = ssub.s32 %s14, 2
        // Predicated region
        $region49: #{tpu_custom_call.1} parent=47 // pred_check
          %p457 = pneg %p170
        $region50: #{tpu_custom_call.1} parent=47 // pred_check_branch
          %459 = sbr.rel (%p457) target = $region52
        $region51: #{tpu_custom_call.1} parent=47 // pred_region
          %s460 = sand.u32 %s155, 1
          %s461 = scalar_lea.sflag [#allocation4], %s460
          %s462 = sand.u32 %s155, 1
          %s463 = smul.addr %s462, 16
          %s464 = scalar_lea.vmem [#allocation5], %s463
          %465 = dma.done %s461, 256
        $region52: #{tpu_custom_call.1} parent=47 // pred_fallthru
          _
      $region48: #{tpu_custom_call.1} parent=5 // pred_fallthru
        _
    $region6: #{tpu_custom_call.1} parent=1 // loop_footer
      %s18 = sadd.s32 1, %s14
    $region7: #{tpu_custom_call.1} parent=1 // loop_footer_branch
      %13 = sbr.rel target = $region3
    $region8: #{tpu_custom_call.1} parent=1 // loop_exit
      _
    %466 = vsyncpa [#allocation3], 1
    %s467 = scalar_lea.sflag [#allocation3], 1
    %468 = vsyncpa %s467, 1
    %469 = vsyncpa [#allocation4], 1
    %s470 = scalar_lea.sflag [#allocation4], 1
    %471 = vsyncpa %s470, 1

</llo_original>
